<compile_context>
chip_gen: v5e
topology: v5e:2x2
jax: 0.10.0
libtpu: 0.0.40
codegen_flags: <defaults>
</compile_context>

<pallas_src>
import jax
import jax.numpy as jnp
from jax.experimental import pallas as pl
from jax.experimental.pallas import tpu as pltpu


# ----------------------------- Pallas kernel -------------------------------

def make_encoder_kernel(n_hidden_layers, conditional, num_labels):
    """Builds the fused kernel body for a fixed layer count / conditionality.

    Ref order: x, [c, w_c], (w_i, b_i) * n_hidden_layers, w_heads, b_heads, out
    """

    def kernel(*refs):
        it = iter(refs)
        x_ref = next(it)
        if conditional:
            c_ref = next(it)
            wc_ref = next(it)
        layers = [(next(it), next(it)) for _ in range(n_hidden_layers)]
        wh_ref = next(it)
        bh_ref = next(it)
        out_ref = next(it)

        h = x_ref[...].astype(jnp.float32)

        # First hidden layer, with the conditional label contribution fused in:
        # concat([x, one_hot(c)]) @ W1  ==  x @ W_x + one_hot(c) @ W_c
        w0_ref, b0_ref = layers[0]
        y = jnp.dot(h, w0_ref[...], preferred_element_type=jnp.float32)
        if conditional:
            tb = y.shape[0]
            lane_ids = jax.lax.broadcasted_iota(jnp.int32, (tb, num_labels), 1)
            onehot = (lane_ids == c_ref[...]).astype(jnp.float32)
            y = y + jnp.dot(onehot, wc_ref[...],
                            preferred_element_type=jnp.float32)
        h = jnp.maximum(y + b0_ref[...], 0.0)

        # Remaining hidden layers (Python loop -> fully unrolled at trace time,
        # activations stay on-chip).
        for w_ref, b_ref in layers[1:]:
            h = jnp.maximum(
                jnp.dot(h, w_ref[...], preferred_element_type=jnp.float32)
                + b_ref[...],
                0.0)

        # Both heads as one lane-dense GEMM: [mean | log_var] = h @ [Wm | Wv] + [bm | bv]
        out_ref[...] = (
            jnp.dot(h, wh_ref[...], preferred_element_type=jnp.float32)
            + bh_ref[...]
        ).astype(out_ref.dtype)

    return kernel


# ------------------------------ Encoder model ------------------------------

def idx2onehot(idx, n):
    # JAX equivalent of the torch helper (used only by the pure-JAX reference).
    if idx.ndim == 2:
        idx = idx[:, 0]
    return jax.nn.one_hot(idx, n, dtype=jnp.float32)


def init_encoder_params(key, layer_size, latent_size, conditional, num_labels):
    """Deterministic parameter init matching the PyTorch module's shapes.

    layer_size is consumed the same way as the PyTorch __init__:
    if conditional, layer_size[0] += num_labels.
    """
    layer_size = list(layer_size)
    if conditional:
        layer_size[0] += num_labels

    params = {"mlp": []}
    for idx in range(len(layer_size) - 1):
        fan_in, fan_out = layer_size[idx], layer_size[idx + 1]
        key, kw, kb = jax.random.split(key, 3)
        bound = 1.0 / jnp.sqrt(fan_in)
        w = jax.random.uniform(kw, (fan_in, fan_out), jnp.float32, -bound, bound)
        b = jax.random.uniform(kb, (1, fan_out), jnp.float32, -bound, bound)
        params["mlp"].append((w, b))

    fan_in = layer_size[-1]
    bound = 1.0 / jnp.sqrt(fan_in)
    key, k1, k2, k3, k4 = jax.random.split(key, 5)
    params["w_mean"] = jax.random.uniform(
        k1, (fan_in, latent_size), jnp.float32, -bound, bound)
    params["b_mean"] = jax.random.uniform(
        k2, (1, latent_size), jnp.float32, -bound, bound)
    params["w_logvar"] = jax.random.uniform(
        k3, (fan_in, latent_size), jnp.float32, -bound, bound)
    params["b_logvar"] = jax.random.uniform(
        k4, (1, latent_size), jnp.float32, -bound, bound)
    return params


def encoder_forward(params, x, c=None, *, conditional=True, num_labels=10):
    """Fused Pallas forward: returns (mean, log_var)."""
    B, D_x = x.shape
    mlp = list(params["mlp"])
    latent = params["w_mean"].shape[1]

    # --- parameter packing (cheap glue, done outside the kernel) ---
    # Heads merged into one lane-dense weight/bias.
    w_heads = jnp.concatenate([params["w_mean"], params["w_logvar"]], axis=1)
    b_heads = jnp.concatenate([params["b_mean"], params["b_logvar"]], axis=1)

    if conditional:
        w0_full, b0 = mlp[0]
        w0_x = w0_full[:D_x]          # (D_x, H1)
        w0_c = w0_full[D_x:]          # (num_labels, H1)
        layer_list = [(w0_x, b0)] + mlp[1:]
        c_col = jnp.asarray(c).reshape(B, 1).astype(jnp.int32)
    else:
        layer_list = mlp

    # --- batch tiling: block multiple of 8, "parallel" grid over batch ---
    TB_MAX = 256
    p_b = ((B + 7) // 8) * 8
    tb = min(p_b, TB_MAX)
    p_b = ((p_b + tb - 1) // tb) * tb
    if p_b != B:
        x_in = jnp.zeros((p_b, D_x), x.dtype).at[:B].set(x)
        if conditional:
            c_in = jnp.zeros((p_b, 1), jnp.int32).at[:B].set(c_col)
    else:
        x_in = x
        if conditional:
            c_in = c_col
    grid = (p_b // tb,)

    full2d = lambda arr: pl.BlockSpec(arr.shape, lambda i: (0, 0))

    in_arrays = [x_in]
    in_specs = [pl.BlockSpec((tb, D_x), lambda i: (i, 0))]
    if conditional:
        in_arrays += [c_in, w0_c]
        in_specs += [pl.BlockSpec((tb, 1), lambda i: (i, 0)), full2d(w0_c)]
    for w, b in layer_list:
        in_arrays += [w, b]
        in_specs += [full2d(w), full2d(b)]
    in_arrays += [w_heads, b_heads]
    in_specs += [full2d(w_heads), full2d(b_heads)]

    # --- cost estimate so XLA schedules the tiny call tightly ---
    mat_ws = ([w0_c] if conditional else []) + [w for w, _ in layer_list] + [w_heads]
    flops = sum(2 * p_b * w.shape[0] * w.shape[1] for w in mat_ws)
    bytes_accessed = (
        sum(int(a.size) * a.dtype.itemsize for a in in_arrays)
        + p_b * 2 * latent * 4)
    cost = pl.CostEstimate(flops=flops, transcendentals=0,
                           bytes_accessed=bytes_accessed)

    kernel = make_encoder_kernel(len(layer_list), conditional, num_labels)
    out = pl.pallas_call(
        kernel,
        out_shape=jax.ShapeDtypeStruct((p_b, 2 * latent), jnp.float32),
        grid=grid,
        in_specs=in_specs,
        out_specs=pl.BlockSpec((tb, 2 * latent), lambda i: (i, 0)),
        compiler_params=pltpu.CompilerParams(
            dimension_semantics=("parallel",)),
        cost_estimate=cost,
    )(*in_arrays)

    out = out[:B]
    return out[:, :latent], out[:, latent:]


def encoder_reference(params, x, c=None, *, conditional=True, num_labels=10):
    # Pure-JAX reference mirroring the PyTorch module for correctness checking.
    if conditional:
        x = jnp.concatenate((x, idx2onehot(c, num_labels)), axis=-1)
    for w, b in params["mlp"]:
        x = jnp.maximum(x @ w + b, 0.0)
    return x @ params["w_mean"] + params["b_mean"], \
           x @ params["w_logvar"] + params["b_logvar"]


# ----------------------------------- main -----------------------------------

if __name__ == "__main__":
    key = jax.random.PRNGKey(0)

    # Small shapes consistent with the module's forward.
    batch = 8
    layer_size = [32, 64, 32]   # Encoder MLP sizes (before conditional bump)
    latent_size = 16
    num_labels = 10
    conditional = True

    k_params, k_x, k_c = jax.random.split(key, 3)
    params = init_encoder_params(
        k_params, layer_size, latent_size, conditional, num_labels)

    x = jax.random.normal(k_x, (batch, layer_size[0]), jnp.float32)
    c = jax.random.randint(k_c, (batch,), 0, num_labels, jnp.int32)

    mean, log_var = encoder_forward(
        params, x, c, conditional=conditional, num_labels=num_labels)
    jax.block_until_ready((mean, log_var))

    mean_ref, log_var_ref = encoder_reference(
        params, x, c, conditional=conditional, num_labels=num_labels)

    assert mean.shape == (batch, latent_size)
    assert log_var.shape == (batch, latent_size)
    assert jnp.allclose(mean, mean_ref, atol=1e-5, rtol=1e-5)
    assert jnp.allclose(log_var, log_var_ref, atol=1e-5, rtol=1e-5)

    print("KERNEL_OK")
</pallas_src>

<mosaic_0001>
module attributes {stable_mosaic.version = 11 : i64} {
  func.func @kernel(%arg0: i32, %arg1: memref<8x32xf32, #tpu.memory_space<vmem>>, %arg2: memref<8x1xi32, #tpu.memory_space<vmem>>, %arg3: memref<10x64xf32, #tpu.memory_space<vmem>>, %arg4: memref<32x64xf32, #tpu.memory_space<vmem>>, %arg5: memref<1x64xf32, #tpu.memory_space<vmem>>, %arg6: memref<64x32xf32, #tpu.memory_space<vmem>>, %arg7: memref<1x32xf32, #tpu.memory_space<vmem>>, %arg8: memref<32x32xf32, #tpu.memory_space<vmem>>, %arg9: memref<1x32xf32, #tpu.memory_space<vmem>>, %arg10: memref<8x32xf32, #tpu.memory_space<vmem>>) attributes {dimension_semantics = [#tpu.dimension_semantics<parallel>], iteration_bounds = array<i64: 1>, scalar_prefetch = 0 : i64, scratch_operands = 0 : i64, tpu.core_type = #tpu.core_type<tc>, window_params = [{transform_indices = @transform_0, window_bounds = array<i64: 8, 32>}, {transform_indices = @transform_1, window_bounds = array<i64: 8, 1>}, {pipeline_mode = #tpu.pipeline_mode<synchronous>, transform_indices = @transform_2, window_bounds = array<i64: 10, 64>}, {pipeline_mode = #tpu.pipeline_mode<synchronous>, transform_indices = @transform_3, window_bounds = array<i64: 32, 64>}, {pipeline_mode = #tpu.pipeline_mode<synchronous>, transform_indices = @transform_4, window_bounds = array<i64: 1, 64>}, {pipeline_mode = #tpu.pipeline_mode<synchronous>, transform_indices = @transform_5, window_bounds = array<i64: 64, 32>}, {pipeline_mode = #tpu.pipeline_mode<synchronous>, transform_indices = @transform_6, window_bounds = array<i64: 1, 32>}, {pipeline_mode = #tpu.pipeline_mode<synchronous>, transform_indices = @transform_7, window_bounds = array<i64: 32, 32>}, {pipeline_mode = #tpu.pipeline_mode<synchronous>, transform_indices = @transform_8, window_bounds = array<i64: 1, 32>}, {transform_indices = @transform_9, window_bounds = array<i64: 8, 32>}]} {
    %c0 = arith.constant 0 : index
    %c0_0 = arith.constant 0 : index
    %0 = vector.load %arg1[%c0, %c0_0] : memref<8x32xf32, #tpu.memory_space<vmem>>, vector<8x32xf32>
    %c0_1 = arith.constant 0 : index
    %c0_2 = arith.constant 0 : index
    %1 = vector.load %arg4[%c0_1, %c0_2] : memref<32x64xf32, #tpu.memory_space<vmem>>, vector<32x64xf32>
    %cst = arith.constant dense<0.000000e+00> : vector<8x64xf32>
    %2 = tpu.matmul %0, %1, %cst {dimension_numbers = #tpu.dot_dimension_numbers<[1], [0], [0], [1], [0, 0, 1, 1], [], []>} : vector<8x32xf32>, vector<32x64xf32>, vector<8x64xf32> -> vector<8x64xf32>
    %3 = tpu.iota {dimensions = array<i32: 1>} : vector<8x10xi32>
    %c0_3 = arith.constant 0 : index
    %c0_4 = arith.constant 0 : index
    %4 = vector.load %arg2[%c0_3, %c0_4] : memref<8x1xi32, #tpu.memory_space<vmem>>, vector<8x1xi32>
    %5 = vector.broadcast %4 : vector<8x1xi32> to vector<8x10xi32>
    %6 = arith.cmpi eq, %3, %5 : vector<8x10xi32>
    %7 = arith.extui %6 : vector<8x10xi1> to vector<8x10xi32>
    %8 = arith.sitofp %7 : vector<8x10xi32> to vector<8x10xf32>
    %c0_5 = arith.constant 0 : index
    %c0_6 = arith.constant 0 : index
    %9 = vector.load %arg3[%c0_5, %c0_6] : memref<10x64xf32, #tpu.memory_space<vmem>>, vector<10x64xf32>
    %cst_7 = arith.constant dense<0.000000e+00> : vector<8x64xf32>
    %10 = tpu.matmul %8, %9, %cst_7 {dimension_numbers = #tpu.dot_dimension_numbers<[1], [0], [0], [1], [0, 0, 1, 1], [], []>} : vector<8x10xf32>, vector<10x64xf32>, vector<8x64xf32> -> vector<8x64xf32>
    %11 = arith.addf %2, %10 : vector<8x64xf32>
    %c0_8 = arith.constant 0 : index
    %c0_9 = arith.constant 0 : index
    %12 = vector.load %arg5[%c0_8, %c0_9] : memref<1x64xf32, #tpu.memory_space<vmem>>, vector<1x64xf32>
    %13 = vector.broadcast %12 : vector<1x64xf32> to vector<8x64xf32>
    %14 = arith.addf %11, %13 : vector<8x64xf32>
    %cst_10 = arith.constant 0.000000e+00 : f32
    %15 = vector.broadcast %cst_10 : f32 to vector<8x64xf32>
    %16 = arith.maximumf %14, %15 : vector<8x64xf32>
    %c0_11 = arith.constant 0 : index
    %c0_12 = arith.constant 0 : index
    %17 = vector.load %arg6[%c0_11, %c0_12] : memref<64x32xf32, #tpu.memory_space<vmem>>, vector<64x32xf32>
    %cst_13 = arith.constant dense<0.000000e+00> : vector<8x32xf32>
    %18 = tpu.matmul %16, %17, %cst_13 {dimension_numbers = #tpu.dot_dimension_numbers<[1], [0], [0], [1], [0, 0, 1, 1], [], []>} : vector<8x64xf32>, vector<64x32xf32>, vector<8x32xf32> -> vector<8x32xf32>
    %c0_14 = arith.constant 0 : index
    %c0_15 = arith.constant 0 : index
    %19 = vector.load %arg7[%c0_14, %c0_15] : memref<1x32xf32, #tpu.memory_space<vmem>>, vector<1x32xf32>
    %20 = vector.broadcast %19 : vector<1x32xf32> to vector<8x32xf32>
    %21 = arith.addf %18, %20 : vector<8x32xf32>
    %cst_16 = arith.constant 0.000000e+00 : f32
    %22 = vector.broadcast %cst_16 : f32 to vector<8x32xf32>
    %23 = arith.maximumf %21, %22 : vector<8x32xf32>
    %c0_17 = arith.constant 0 : index
    %c0_18 = arith.constant 0 : index
    %24 = vector.load %arg8[%c0_17, %c0_18] : memref<32x32xf32, #tpu.memory_space<vmem>>, vector<32x32xf32>
    %cst_19 = arith.constant dense<0.000000e+00> : vector<8x32xf32>
    %25 = tpu.matmul %23, %24, %cst_19 {dimension_numbers = #tpu.dot_dimension_numbers<[1], [0], [0], [1], [0, 0, 1, 1], [], []>} : vector<8x32xf32>, vector<32x32xf32>, vector<8x32xf32> -> vector<8x32xf32>
    %c0_20 = arith.constant 0 : index
    %c0_21 = arith.constant 0 : index
    %26 = vector.load %arg9[%c0_20, %c0_21] : memref<1x32xf32, #tpu.memory_space<vmem>>, vector<1x32xf32>
    %27 = vector.broadcast %26 : vector<1x32xf32> to vector<8x32xf32>
    %28 = arith.addf %25, %27 : vector<8x32xf32>
    %c0_22 = arith.constant 0 : index
    %c0_23 = arith.constant 0 : index
    %29 = vector.load %arg10[%c0_22, %c0_23] : memref<8x32xf32, #tpu.memory_space<vmem>>, vector<8x32xf32>
    tpu.vector_store %arg10[%c0_22, %c0_23], %28 {strides = array<i32>} : memref<8x32xf32, #tpu.memory_space<vmem>>, vector<8x32xf32>,
    return
  }
  func.func @transform_0(%arg0: i32) -> (i32, i32) {
    %c0_i32 = arith.constant 0 : i32
    %c0_i32_0 = arith.constant 0 : i32
    return %arg0, %c0_i32 : i32, i32
  }
  func.func @transform_1(%arg0: i32) -> (i32, i32) {
    %c0_i32 = arith.constant 0 : i32
    %c0_i32_0 = arith.constant 0 : i32
    return %arg0, %c0_i32 : i32, i32
  }
  func.func @transform_2(%arg0: i32) -> (i32, i32) {
    %c0_i32 = arith.constant 0 : i32
    %c0_i32_0 = arith.constant 0 : i32
    %c0_i32_1 = arith.constant 0 : i32
    return %c0_i32, %c0_i32_0 : i32, i32
  }
  func.func @transform_3(%arg0: i32) -> (i32, i32) {
    %c0_i32 = arith.constant 0 : i32
    %c0_i32_0 = arith.constant 0 : i32
    %c0_i32_1 = arith.constant 0 : i32
    return %c0_i32, %c0_i32_0 : i32, i32
  }
  func.func @transform_4(%arg0: i32) -> (i32, i32) {
    %c0_i32 = arith.constant 0 : i32
    %c0_i32_0 = arith.constant 0 : i32
    %c0_i32_1 = arith.constant 0 : i32
    return %c0_i32, %c0_i32_0 : i32, i32
  }
  func.func @transform_5(%arg0: i32) -> (i32, i32) {
    %c0_i32 = arith.constant 0 : i32
    %c0_i32_0 = arith.constant 0 : i32
    %c0_i32_1 = arith.constant 0 : i32
    return %c0_i32, %c0_i32_0 : i32, i32
  }
  func.func @transform_6(%arg0: i32) -> (i32, i32) {
    %c0_i32 = arith.constant 0 : i32
    %c0_i32_0 = arith.constant 0 : i32
    %c0_i32_1 = arith.constant 0 : i32
    return %c0_i32, %c0_i32_0 : i32, i32
  }
  func.func @transform_7(%arg0: i32) -> (i32, i32) {
    %c0_i32 = arith.constant 0 : i32
    %c0_i32_0 = arith.constant 0 : i32
    %c0_i32_1 = arith.constant 0 : i32
    return %c0_i32, %c0_i32_0 : i32, i32
  }
  func.func @transform_8(%arg0: i32) -> (i32, i32) {
    %c0_i32 = arith.constant 0 : i32
    %c0_i32_0 = arith.constant 0 : i32
    %c0_i32_1 = arith.constant 0 : i32
    return %c0_i32, %c0_i32_0 : i32, i32
  }
  func.func @transform_9(%arg0: i32) -> (i32, i32) {
    %c0_i32 = arith.constant 0 : i32
    %c0_i32_0 = arith.constant 0 : i32
    return %arg0, %c0_i32 : i32, i32
  }
}

</mosaic_0001>

<llo_original>
// kernel: tpu_custom_call.1
$region0: #{tpu_custom_call.1}
  #allocation0 [shape = 'u32[]', space=smem, size = 0x4, offset = 0x4, fixed_abs, tag = 'smem constant byte address 0x4 - core index']
  #allocation1 [shape = 'u32[72,128]{1,0:T(1,128)}', space=vmem, size = 0x9000, scoped, tag = 'internal scratch']
  %s0 = inlined_call_operand.vmem [shape: f32[8,32], index: 0, kind: input, shape index: {}]
  %s1 = inlined_call_operand.vmem [shape: s32[8,1], index: 1, kind: input, shape index: {}]
  %s2 = inlined_call_operand.vmem [shape: f32[10,64], index: 2, kind: input, shape index: {}]
  %s3 = inlined_call_operand.vmem [shape: f32[32,64], index: 3, kind: input, shape index: {}]
  %s4 = inlined_call_operand.vmem [shape: f32[1,64], index: 4, kind: input, shape index: {}]
  %s5 = inlined_call_operand.vmem [shape: f32[64,32], index: 5, kind: input, shape index: {}]
  %s6 = inlined_call_operand.vmem [shape: f32[1,32], index: 6, kind: input, shape index: {}]
  %s7 = inlined_call_operand.vmem [shape: f32[32,32], index: 7, kind: input, shape index: {}]
  %s8 = inlined_call_operand.vmem [shape: f32[1,32], index: 8, kind: input, shape index: {}]
  %s9 = inlined_call_operand.hbm [shape: f32[8,32], index: 9, kind: output, shape index: {}]
  %s10 = sld [smem:[#allocation0]]
  $region46: #{tpu_custom_call.1} parent=0
    _
  %s12 = ssub.s32 1, %s10
  %s13 = scalar_select 0, %s12, %s10
  $region1: #{tpu_custom_call.1} parent=0
    #allocation2 [shape = 'u8[4096]{0}', space=vmem, size = 0x1000, scoped, tag = 'output window, operand 0, single buffered']
    #allocation3 [shape = 's32[1]{0}', space=sflag, size = 0x4, scoped, tag = 'scoped memory for tpu_custom_call.1']
    %14 = vsyncpa [#allocation3], 0
    // Predicated region
    $region2: #{tpu_custom_call.1} parent=1 // pred_check
      _
    $region3: #{tpu_custom_call.1} parent=1 // pred_check_branch
      %16 = sbr.rel (0) target = $region5
    $region4: #{tpu_custom_call.1} parent=1 // pred_region
      _
    $region5: #{tpu_custom_call.1} parent=1 // pred_fallthru
      _
    // Predicated region
    $region6: #{tpu_custom_call.1} parent=1 // pred_check
      _
    $region7: #{tpu_custom_call.1} parent=1 // pred_check_branch
      %18 = sbr.rel (0) target = $region9
    $region8: #{tpu_custom_call.1} parent=1 // pred_region
      _
    $region9: #{tpu_custom_call.1} parent=1 // pred_fallthru
      _
    // Predicated region
    $region10: #{tpu_custom_call.1} parent=1 // pred_check
      _
    $region11: #{tpu_custom_call.1} parent=1 // pred_check_branch
      %20 = sbr.rel (0) target = $region13
    $region12: #{tpu_custom_call.1} parent=1 // pred_region
      _
    $region13: #{tpu_custom_call.1} parent=1 // pred_fallthru
      _
    // Predicated region
    $region14: #{tpu_custom_call.1} parent=1 // pred_check
      _
    $region15: #{tpu_custom_call.1} parent=1 // pred_check_branch
      %22 = sbr.rel (0) target = $region17
    $region16: #{tpu_custom_call.1} parent=1 // pred_region
      _
    $region17: #{tpu_custom_call.1} parent=1 // pred_fallthru
      _
    // Predicated region
    $region18: #{tpu_custom_call.1} parent=1 // pred_check
      _
    $region19: #{tpu_custom_call.1} parent=1 // pred_check_branch
      %24 = sbr.rel (0) target = $region21
    $region20: #{tpu_custom_call.1} parent=1 // pred_region
      _
    $region21: #{tpu_custom_call.1} parent=1 // pred_fallthru
      _
    // Predicated region
    $region22: #{tpu_custom_call.1} parent=1 // pred_check
      _
    $region23: #{tpu_custom_call.1} parent=1 // pred_check_branch
      %26 = sbr.rel (0) target = $region25
    $region24: #{tpu_custom_call.1} parent=1 // pred_region
      _
    $region25: #{tpu_custom_call.1} parent=1 // pred_fallthru
      _
    // Predicated region
    $region26: #{tpu_custom_call.1} parent=1 // pred_check
      _
    $region27: #{tpu_custom_call.1} parent=1 // pred_check_branch
      %28 = sbr.rel (0) target = $region29
    $region28: #{tpu_custom_call.1} parent=1 // pred_region
      _
    $region29: #{tpu_custom_call.1} parent=1 // pred_fallthru
      _
    // Predicated region
    $region30: #{tpu_custom_call.1} parent=1 // pred_check
      _
    $region31: #{tpu_custom_call.1} parent=1 // pred_check_branch
      %30 = sbr.rel (0) target = $region33
    $region32: #{tpu_custom_call.1} parent=1 // pred_region
      _
    $region33: #{tpu_custom_call.1} parent=1 // pred_fallthru
      _
    // Predicated region
    $region34: #{tpu_custom_call.1} parent=1 // pred_check
      _
    $region35: #{tpu_custom_call.1} parent=1 // pred_check_branch
      %32 = sbr.rel (0) target = $region37
    $region36: #{tpu_custom_call.1} parent=1 // pred_region
      _
    $region37: #{tpu_custom_call.1} parent=1 // pred_fallthru
      _
    %v33 = vld [vmem:[%s0] sm:$0xff]
    %v34 = vld [vmem:[%s3] sm:$0xff]
    %v35 = vld [vmem:[%s3 + $0x8] sm:$0xff]
    %v36 = vld [vmem:[%s3 + $0x10] sm:$0xff]
    %v37 = vld [vmem:[%s3 + $0x18] sm:$0xff]
    %v38 = vlaneseq
    %v39 = vand.u32 %v38, 127
    %v40 = vld [vmem:[%s1] sm:$0xff]
    %41 = vset.pattern.permute.xlu0 0
    %42 = vperm.xlu0 %41, %v40
    %v43 = vpop.permute.xlu0 %42
    %vm44 = vcmp.eq.s32.totalorder %v39, %v43
    %v45 = vsel %vm44, 1, 0
    %v46 = vcvt.s32.f32 %v45
    %v47 = vld [vmem:[%s2] sm:$0xff]
    %v48 = vld [vmem:[%s2 + $0x8] sm:$0x3]
    %vm49 = vcmask 80896
    %v51 = vsel %vm49, %v46, 0
    %vm53 = vcmask 1041408
    %v55 = vsel %vm53, %v48, 0
    %57 = vmatpush.msra.mxu0 0.0
    %58 = vmatpush.msra.mxu0 0.0
    %59 = vmatpush.msra.mxu0 0.0
    %60 = vmatpush.msra.mxu0 0.0
    %61 = vmatpush.msra.mxu0 0.0
    %62 = vmatpush.msra.mxu0 0.0
    %63 = vmatpush.msra.mxu0 0.0
    %64 = vmatpush.msra.mxu0 0.0
    %65 = vmatpush.msra.mxu0 0.0
    %66 = vmatpush.msra.mxu0 0.0
    %67 = vmatpush.msra.mxu0 0.0
    %68 = vmatpush.msra.mxu0 0.0
    %69 = vmatpush.msra.mxu0 0.0
    %70 = vmatpush.msra.mxu0 0.0
    %71 = vmatpush.msra.mxu0 %v55
    %72 = vmatpush.msra.mxu0 %v47
    %73 = vmatmul.f32.gmra.mxu0 %v51
    %v74 = vpop.f32.mrf.mxu0
    %v75 = vadd.f32 0.0, %v74
    %76 = vdwg.mxu0
    %vm77 = vcmask 261120
    %v79 = vsel %vm77, %v33, 0
    %81 = vmatpush.msra.mxu0 0.0
    %82 = vmatpush.msra.mxu0 0.0
    %83 = vmatpush.msra.mxu0 0.0
    %84 = vmatpush.msra.mxu0 0.0
    %85 = vmatpush.msra.mxu0 0.0
    %86 = vmatpush.msra.mxu0 0.0
    %87 = vmatpush.msra.mxu0 0.0
    %88 = vmatpush.msra.mxu0 0.0
    %89 = vmatpush.msra.mxu0 0.0
    %90 = vmatpush.msra.mxu0 0.0
    %91 = vmatpush.msra.mxu0 0.0
    %92 = vmatpush.msra.mxu0 0.0
    %93 = vmatpush.msra.mxu0 %v37
    %94 = vmatpush.msra.mxu0 %v36
    %95 = vmatpush.msra.mxu0 %v35
    %96 = vmatpush.msra.mxu0 %v34
    %97 = vmatmul.f32.gmra.mxu0 %v79
    %v98 = vpop.f32.mrf.mxu0
    %v99 = vadd.f32 %v75, %v98
    %100 = vdwg.mxu0
    %v101 = vld [vmem:[%s4] sm:$0x1]
    %v103 = vperm.slane %v101, 0
    %v105 = vadd.f32 %v99, %v103
    %v106 = vmax.f32 %v105, 0.0
    %v107 = vld [vmem:[%s5] sm:$0xff]
    %v108 = vld [vmem:[%s5 + $0x8] sm:$0xff]
    %v109 = vld [vmem:[%s5 + $0x10] sm:$0xff]
    %v110 = vld [vmem:[%s5 + $0x18] sm:$0xff]
    %v111 = vld [vmem:[%s5 + $0x20] sm:$0xff]
    %v112 = vld [vmem:[%s5 + $0x28] sm:$0xff]
    %v113 = vld [vmem:[%s5 + $0x30] sm:$0xff]
    %v114 = vld [vmem:[%s5 + $0x38] sm:$0xff]
    %v115 = vld [vmem:[%s6] sm:$0x1]
    %v117 = vperm.slane %v115, 0
    %vm119 = vcmask 523264
    %v121 = vsel %vm119, %v106, 0
    %123 = vmatpush.msra.mxu0 0.0
    %124 = vmatpush.msra.mxu0 0.0
    %125 = vmatpush.msra.mxu0 0.0
    %126 = vmatpush.msra.mxu0 0.0
    %127 = vmatpush.msra.mxu0 0.0
    %128 = vmatpush.msra.mxu0 0.0
    %129 = vmatpush.msra.mxu0 0.0
    %130 = vmatpush.msra.mxu0 0.0
    %131 = vmatpush.msra.mxu0 %v114
    %132 = vmatpush.msra.mxu0 %v113
    %133 = vmatpush.msra.mxu0 %v112
    %134 = vmatpush.msra.mxu0 %v111
    %135 = vmatpush.msra.mxu0 %v110
    %136 = vmatpush.msra.mxu0 %v109
    %137 = vmatpush.msra.mxu0 %v108
    %138 = vmatpush.msra.mxu0 %v107
    %139 = vmatmul.f32.gmra.mxu0 %v121
    %v140 = vpop.f32.mrf.mxu0
    %v141 = vadd.f32 %v117, %v140
    %142 = vdwg.mxu0
    %v143 = vmax.f32 %v141, 0.0
    %v144 = vld [vmem:[%s7] sm:$0xff]
    %v145 = vld [vmem:[%s7 + $0x8] sm:$0xff]
    %v146 = vld [vmem:[%s7 + $0x10] sm:$0xff]
    %v147 = vld [vmem:[%s7 + $0x18] sm:$0xff]
    %v148 = vld [vmem:[%s8] sm:$0x1]
    %v150 = vperm.slane %v148, 0
    %v153 = vsel %vm77, %v143, 0
    %155 = vmatpush.msra.mxu0 0.0
    %156 = vmatpush.msra.mxu0 0.0
    %157 = vmatpush.msra.mxu0 0.0
    %158 = vmatpush.msra.mxu0 0.0
    %159 = vmatpush.msra.mxu0 0.0
    %160 = vmatpush.msra.mxu0 0.0
    %161 = vmatpush.msra.mxu0 0.0
    %162 = vmatpush.msra.mxu0 0.0
    %163 = vmatpush.msra.mxu0 0.0
    %164 = vmatpush.msra.mxu0 0.0
    %165 = vmatpush.msra.mxu0 0.0
    %166 = vmatpush.msra.mxu0 0.0
    %167 = vmatpush.msra.mxu0 %v147
    %168 = vmatpush.msra.mxu0 %v146
    %169 = vmatpush.msra.mxu0 %v145
    %170 = vmatpush.msra.mxu0 %v144
    %171 = vmatmul.f32.gmra.mxu0 %v153
    %v172 = vpop.f32.mrf.mxu0
    %v173 = vadd.f32 %v150, %v172
    %174 = vdwg.mxu0
    %175 = vst.msk [vmem:[#allocation2] sm:$0xff] %vm77, %v173
    // Predicated region
    $region38: #{tpu_custom_call.1} parent=1 // pred_check
      _
    $region39: #{tpu_custom_call.1} parent=1 // pred_check_branch
      %177 = sbr.rel (0) target = $region41
    $region40: #{tpu_custom_call.1} parent=1 // pred_region
      %179 = vsyncadd [#allocation3], 0
      %s181 = sshll.u32 [#allocation2], 4
      %s182 = int_to_ptr.vmem [resolvable:$true] %s181
      %s183 = sshll.u32 %s9, 4
      %s184 = int_to_ptr.hbm [resolvable:$true] %s183
      %186 = dma.vmem_to_hbm [thread:$0]  %s182, 128, %s184, [#allocation3]
    $region41: #{tpu_custom_call.1} parent=1 // pred_fallthru
      _
    // Predicated region
    $region42: #{tpu_custom_call.1} parent=1 // pred_check
      _
    $region43: #{tpu_custom_call.1} parent=1 // pred_check_branch
      %188 = sbr.rel (0) target = $region45
    $region44: #{tpu_custom_call.1} parent=1 // pred_region
      %190 = dma.done [#allocation3], 128
    $region45: #{tpu_custom_call.1} parent=1 // pred_fallthru
      _
    %191 = vsyncpa [#allocation3], 1

</llo_original>
